<compile_context>
chip_gen: v7x
topology: tpu7x:2x2x1
jax: 0.10.0
libtpu: 0.0.40
codegen_flags: <defaults>
</compile_context>

<pallas_src>
import functools
import math

import jax
import jax.numpy as jnp
from jax import lax
from jax.experimental import pallas as pl
from jax.experimental.pallas import tpu as pltpu


def _round_up(x, m):
    return (x + m - 1) // m * m


def _tile_defaults():
    """(tm, tn, vmem_limit_bytes) per TPU generation."""
    try:
        kind = jax.devices()[0].device_kind.lower()
    except Exception:  # pragma: no cover
        kind = ""
    if "v5 lite" in kind or "v5e" in kind or "v5lite" in kind:
        # v5e: ~240 flop/B roofline — moderate bf16 tiles already compute-bound;
        # the win is lifting the 16 MiB scoped-VMEM default.
        return 1024, 512, 64 << 20
    if "v7" in kind:
        # v7x: only 64 MiB physical VMEM — cap tiles, leave headroom.
        return 1024, 1024, 48 << 20
    if "v6" in kind:
        # v6e: push per-step arithmetic intensity past the ~640 flop/B knee;
        # 128 MiB physical VMEM easily holds the double buffers + f32 temps.
        return 2048, 1024, 100 << 20
    # Unknown / other generations: conservative.
    return 1024, 1024, 64 << 20


# ----------------------------------------------------------------------------
# Kernel: one (tm x D) activation tile x one (tn x D) weight tile (PyTorch
# [out, in] layout), f32 accumulate, + bias, + exact-erf GELU.
# ----------------------------------------------------------------------------
def bert_intermediate_kernel(x_ref, w_ref, b_ref, o_ref):
    x = x_ref[...]                                   # [tm, D]   (bf16)
    w = w_ref[...]                                   # [tn, D]   (bf16)
    b = b_ref[...]                                   # [1,  tn]  (f32)

    # Contract x's D with w's D -> [tm, tn]; MXU handles the transposed rhs.
    acc = lax.dot_general(
        x, w,
        dimension_numbers=(((1,), (1,)), ((), ())),
        preferred_element_type=jnp.float32,
    ) + b

    # Exact GELU (matches torch.erf variant), computed in f32.
    inv_sqrt2 = jnp.float32(1.0 / math.sqrt(2.0))
    out = acc * jnp.float32(0.5) * (jnp.float32(1.0) + lax.erf(acc * inv_sqrt2))

    o_ref[...] = out.astype(o_ref.dtype)


# ----------------------------------------------------------------------------
# Wrapper
# ----------------------------------------------------------------------------
def bert_intermediate(hidden_states, weight, bias, *, tm=None, tn=None,
                      compute_dtype=jnp.bfloat16):
    """hidden_states: [B, S, D]; weight: [I, D] (PyTorch nn.Linear); bias: [I]."""
    B, S, D = hidden_states.shape
    I = weight.shape[0]
    M = B * S
    out_dtype = hidden_states.dtype

    d_tm, d_tn, vmem_limit = _tile_defaults()
    tm = d_tm if tm is None else tm
    tn = d_tn if tn is None else tn

    # Cast operands for the bf16 MXU path; bias stays f32 (added to f32 acc).
    x2 = hidden_states.reshape(M, D).astype(compute_dtype)
    w = weight.astype(compute_dtype)                 # [I, D] — no transpose
    b2 = bias.astype(jnp.float32).reshape(1, I)

    # Clamp tiles to (padded) problem size; pad so tiles divide evenly.
    tm = min(tm, _round_up(M, 128))
    tn = min(tn, _round_up(I, 128))
    Mp = _round_up(M, tm)
    Ip = _round_up(I, tn)
    if Mp != M:
        x2 = jnp.pad(x2, ((0, Mp - M), (0, 0)))
    if Ip != I:
        w = jnp.pad(w, ((0, Ip - I), (0, 0)))
        b2 = jnp.pad(b2, ((0, 0), (0, Ip - I)))

    grid = (Mp // tm, Ip // tn)

    bytes_accessed = (
        Mp * D * jnp.dtype(compute_dtype).itemsize        # activations
        + Ip * D * jnp.dtype(compute_dtype).itemsize      # weights
        + Ip * 4                                          # bias
        + Mp * Ip * jnp.dtype(out_dtype).itemsize         # output
    )
    cost = pl.CostEstimate(
        flops=2 * Mp * D * Ip,
        transcendentals=Mp * Ip,
        bytes_accessed=bytes_accessed,
    )

    out = pl.pallas_call(
        bert_intermediate_kernel,
        out_shape=jax.ShapeDtypeStruct((Mp, Ip), out_dtype),
        grid_spec=pltpu.PrefetchScalarGridSpec(
            num_scalar_prefetch=0,
            grid=grid,
            in_specs=[
                pl.BlockSpec((tm, D), lambda i, j: (i, 0)),   # activations (resident across j)
                pl.BlockSpec((tn, D), lambda i, j: (j, 0)),   # weight, PyTorch [out, in] layout
                pl.BlockSpec((1, tn), lambda i, j: (0, j)),   # bias
            ],
            out_specs=pl.BlockSpec((tm, tn), lambda i, j: (i, j)),
        ),
        compiler_params=pltpu.CompilerParams(
            dimension_semantics=("parallel", "parallel"),
            vmem_limit_bytes=vmem_limit,
        ),
        cost_estimate=cost,
    )(x2, w, b2)

    if Mp != M or Ip != I:
        out = out[:M, :I]
    return out.reshape(B, S, I)


# ----------------------------------------------------------------------------
# Pure-JAX reference (f32, exact erf) for correctness check
# ----------------------------------------------------------------------------
def bert_intermediate_ref(hidden_states, weight, bias):
    y = jnp.einsum("bsd,id->bsi", hidden_states, weight) + bias
    return y * 0.5 * (1.0 + lax.erf(y / jnp.sqrt(jnp.float32(2.0))))


if __name__ == "__main__":
    # Small BERT-style shapes: batch=2, seq=16, hidden=128, intermediate=4*hidden.
    B, S, D = 2, 16, 128
    I = 4 * D

    key = jax.random.PRNGKey(0)
    k_x, k_w, k_b = jax.random.split(key, 3)
    hidden_states = jax.random.normal(k_x, (B, S, D), jnp.float32)
    weight = 0.02 * jax.random.normal(k_w, (I, D), jnp.float32)   # PyTorch [out, in]
    bias = 0.02 * jax.random.normal(k_b, (I,), jnp.float32)

    fn = jax.jit(bert_intermediate)
    out = fn(hidden_states, weight, bias)
    jax.block_until_ready(out)

    ref = bert_intermediate_ref(hidden_states, weight, bias)
    assert out.shape == (B, S, I)
    # bf16 operands (f32 accumulation) vs f32 reference -> loose-ish tolerance.
    assert jnp.allclose(out, ref, atol=2e-2, rtol=2e-2), "mismatch vs reference"

    print("KERNEL_OK")
</pallas_src>

<mosaic_0001>
module attributes {stable_mosaic.version = 11 : i64} {
  func.func @bert_intermediate_kernel(%arg0: i32, %arg1: i32, %arg2: memref<128x128xbf16, #tpu.memory_space<vmem>>, %arg3: memref<512x128xbf16, #tpu.memory_space<vmem>>, %arg4: memref<1x512xf32, #tpu.memory_space<vmem>>, %arg5: memref<128x512xf32, #tpu.memory_space<vmem>>) attributes {dimension_semantics = [#tpu.dimension_semantics<parallel>, #tpu.dimension_semantics<parallel>], iteration_bounds = array<i64: 1, 1>, scalar_prefetch = 0 : i64, scratch_operands = 0 : i64, tpu.core_type = #tpu.core_type<tc>, window_params = [{transform_indices = @transform_0, window_bounds = array<i64: 128, 128>}, {transform_indices = @transform_1, window_bounds = array<i64: 512, 128>}, {transform_indices = @transform_2, window_bounds = array<i64: 1, 512>}, {transform_indices = @transform_3, window_bounds = array<i64: 128, 512>}]} {
    %c0 = arith.constant 0 : index
    %c0_0 = arith.constant 0 : index
    %0 = vector.load %arg2[%c0, %c0_0] : memref<128x128xbf16, #tpu.memory_space<vmem>>, vector<128x128xbf16>
    %c0_1 = arith.constant 0 : index
    %c0_2 = arith.constant 0 : index
    %1 = vector.load %arg3[%c0_1, %c0_2] : memref<512x128xbf16, #tpu.memory_space<vmem>>, vector<512x128xbf16>
    %c0_3 = arith.constant 0 : index
    %c0_4 = arith.constant 0 : index
    %2 = vector.load %arg4[%c0_3, %c0_4] : memref<1x512xf32, #tpu.memory_space<vmem>>, vector<1x512xf32>
    %cst = arith.constant dense<0.000000e+00> : vector<128x512xf32>
    %3 = tpu.matmul %0, %1, %cst {dimension_numbers = #tpu.dot_dimension_numbers<[1], [1], [0], [0], [0, 0, 1, 0], [], []>} : vector<128x128xbf16>, vector<512x128xbf16>, vector<128x512xf32> -> vector<128x512xf32>
    %4 = vector.broadcast %2 : vector<1x512xf32> to vector<128x512xf32>
    %5 = arith.addf %3, %4 : vector<128x512xf32>
    %cst_5 = arith.constant 5.000000e-01 : f32
    %6 = vector.broadcast %cst_5 : f32 to vector<128x512xf32>
    %7 = arith.mulf %5, %6 : vector<128x512xf32>
    %cst_6 = arith.constant 0.707106769 : f32
    %8 = vector.broadcast %cst_6 : f32 to vector<128x512xf32>
    %9 = arith.mulf %5, %8 : vector<128x512xf32>
    %10 = math.erf %9 : vector<128x512xf32>
    %cst_7 = arith.constant 1.000000e+00 : f32
    %11 = vector.broadcast %cst_7 : f32 to vector<128x512xf32>
    %12 = arith.addf %11, %10 : vector<128x512xf32>
    %13 = arith.mulf %7, %12 : vector<128x512xf32>
    %c0_8 = arith.constant 0 : index
    %c0_9 = arith.constant 0 : index
    %14 = vector.load %arg5[%c0_8, %c0_9] : memref<128x512xf32, #tpu.memory_space<vmem>>, vector<128x512xf32>
    tpu.vector_store %arg5[%c0_8, %c0_9], %13 {strides = array<i32>} : memref<128x512xf32, #tpu.memory_space<vmem>>, vector<128x512xf32>,
    return
  }
  func.func @transform_0(%arg0: i32, %arg1: i32) -> (i32, i32) {
    %c0_i32 = arith.constant 0 : i32
    %c0_i32_0 = arith.constant 0 : i32
    return %arg0, %c0_i32 : i32, i32
  }
  func.func @transform_1(%arg0: i32, %arg1: i32) -> (i32, i32) {
    %c0_i32 = arith.constant 0 : i32
    %c0_i32_0 = arith.constant 0 : i32
    return %arg1, %c0_i32 : i32, i32
  }
  func.func @transform_2(%arg0: i32, %arg1: i32) -> (i32, i32) {
    %c0_i32 = arith.constant 0 : i32
    %c0_i32_0 = arith.constant 0 : i32
    return %c0_i32, %arg1 : i32, i32
  }
  func.func @transform_3(%arg0: i32, %arg1: i32) -> (i32, i32) {
    %c0_i32 = arith.constant 0 : i32
    return %arg0, %arg1 : i32, i32
  }
}

</mosaic_0001>

<llo_original>
// kernel: bert_intermediate.1
$region0: #{bert_intermediate.1}
  #allocation0 [shape = 'u32[]', space=smem, size = 0x4, offset = 0x4, fixed_abs, tag = 'smem constant byte address 0x4 - core index']
  #allocation1 [shape = 'u32[144,128]{1,0:T(1,128)}', space=vmem, size = 0x12000, scoped, tag = 'internal scratch']
  %s0 = inlined_call_operand.hbm [shape: bf16[128,128], index: 0, kind: input, shape index: {}]
  %s1 = inlined_call_operand.hbm [shape: bf16[512,128], index: 1, kind: input, shape index: {}]
  %s2 = inlined_call_operand.hbm [shape: f32[1,512], index: 2, kind: input, shape index: {}]
  %s3 = inlined_call_operand.hbm [shape: f32[128,512], index: 3, kind: output, shape index: {}]
  %s4 = sld [smem:[#allocation0]]
  $region34: #{bert_intermediate.1} parent=0
    _
  %s6 = ssub.s32 1, %s4
  %s7 = scalar_select 0, %s6, %s4
  $region1: #{bert_intermediate.1} parent=0
    #allocation2 [shape = 'u8[32768]{0}', space=vmem, size = 0x8000, scoped, tag = 'input window, operand 0, single buffered']
    #allocation3 [shape = 's32[1]{0}', space=sflag, size = 0x4, scoped, tag = 'scoped memory for bert_intermediate.1']
    #allocation4 [shape = 's32[1]{0}', space=sflag, size = 0x4, scoped, tag = 'scoped memory for bert_intermediate.1']
    #allocation5 [shape = 'u8[131072]{0}', space=vmem, size = 0x20000, scoped, tag = 'input window, operand 1, single buffered']
    #allocation6 [shape = 's32[1]{0}', space=sflag, size = 0x4, scoped, tag = 'scoped memory for bert_intermediate.1']
    #allocation7 [shape = 'u8[2048]{0}', space=vmem, size = 0x800, scoped, tag = 'input window, operand 2, single buffered']
    #allocation8 [shape = 'u8[262144]{0}', space=vmem, size = 0x40000, scoped, tag = 'output window, operand 0, single buffered']
    %8 = vsyncpa [#allocation3], 0
    %9 = vsyncpa [#allocation6], 0
    %10 = vsyncpa [#allocation4], 0
    // Predicated region
    $region2: #{bert_intermediate.1} parent=1 // pred_check
      _
    $region3: #{bert_intermediate.1} parent=1 // pred_check_branch
      %12 = sbr.rel (0) target = $region5
    $region4: #{bert_intermediate.1} parent=1 // pred_region
      %s14 = ssub.s32 1024, 1024
      %15 = vsyncadd [#allocation3], %s14
      %s16 = sshll.u32 [#allocation2], 4
      %s17 = int_to_ptr.vmem [resolvable:$true] %s16
      %22 = dma.hbm_to_vmem [thread:$0]  %s0, 1024, %s17, [#allocation3], 64, 64, 4
    $region5: #{bert_intermediate.1} parent=1 // pred_fallthru
      _
    // Predicated region
    $region6: #{bert_intermediate.1} parent=1 // pred_check
      _
    $region7: #{bert_intermediate.1} parent=1 // pred_check_branch
      %24 = sbr.rel (0) target = $region9
    $region8: #{bert_intermediate.1} parent=1 // pred_region
      %s26 = ssub.s32 4096, 4096
      %27 = vsyncadd [#allocation6], %s26
      %s28 = sshll.u32 [#allocation5], 4
      %s29 = int_to_ptr.vmem [resolvable:$true] %s28
      %34 = dma.hbm_to_vmem [thread:$0]  %s1, 4096, %s29, [#allocation6], 64, 64, 4
    $region9: #{bert_intermediate.1} parent=1 // pred_fallthru
      _
    // Predicated region
    $region10: #{bert_intermediate.1} parent=1 // pred_check
      _
    $region11: #{bert_intermediate.1} parent=1 // pred_check_branch
      %36 = sbr.rel (0) target = $region13
    $region12: #{bert_intermediate.1} parent=1 // pred_region
      %s38 = ssub.s32 64, 64
      %39 = vsyncadd [#allocation6], %s38
      %s41 = sshll.u32 [#allocation7], 4
      %s42 = int_to_ptr.vmem [resolvable:$true] %s41
      %44 = dma.hbm_to_vmem [thread:$0]  %s2, 64, %s42, [#allocation6]
    $region13: #{bert_intermediate.1} parent=1 // pred_fallthru
      _
    // Predicated region
    $region14: #{bert_intermediate.1} parent=1 // pred_check
      _
    $region15: #{bert_intermediate.1} parent=1 // pred_check_branch
      %46 = sbr.rel (0) target = $region17
    $region16: #{bert_intermediate.1} parent=1 // pred_region
      %47 = dma.done [#allocation3], 1024
    $region17: #{bert_intermediate.1} parent=1 // pred_fallthru
      _
    // Predicated region
    $region18: #{bert_intermediate.1} parent=1 // pred_check
      _
    $region19: #{bert_intermediate.1} parent=1 // pred_check_branch
      %49 = sbr.rel (0) target = $region21
    $region20: #{bert_intermediate.1} parent=1 // pred_region
      %50 = dma.done [#allocation6], 4096
    $region21: #{bert_intermediate.1} parent=1 // pred_fallthru
      _
    // Predicated region
    $region22: #{bert_intermediate.1} parent=1 // pred_check
      _
    $region23: #{bert_intermediate.1} parent=1 // pred_check_branch
      %52 = sbr.rel (0) target = $region25
    $region24: #{bert_intermediate.1} parent=1 // pred_region
      %53 = dma.done [#allocation6], 64
    $region25: #{bert_intermediate.1} parent=1 // pred_fallthru
      _
    %v55 = vld [vmem:[#allocation2] sm:$0xf]
    %v56 = vld [vmem:[#allocation2 + $0x4] sm:$0xf]
    %v57 = vld [vmem:[#allocation2 + $0x8] sm:$0xf]
    %v58 = vld [vmem:[#allocation2 + $0xc] sm:$0xf]
    %v59 = vld [vmem:[#allocation2 + $0x10] sm:$0xf]
    %v60 = vld [vmem:[#allocation2 + $0x14] sm:$0xf]
    %v61 = vld [vmem:[#allocation2 + $0x18] sm:$0xf]
    %v62 = vld [vmem:[#allocation2 + $0x1c] sm:$0xf]
    %v63 = vld [vmem:[#allocation2 + $0x20] sm:$0xf]
    %v64 = vld [vmem:[#allocation2 + $0x24] sm:$0xf]
    %v65 = vld [vmem:[#allocation2 + $0x28] sm:$0xf]
    %v66 = vld [vmem:[#allocation2 + $0x2c] sm:$0xf]
    %v67 = vld [vmem:[#allocation2 + $0x30] sm:$0xf]
    %v68 = vld [vmem:[#allocation2 + $0x34] sm:$0xf]
    %v69 = vld [vmem:[#allocation2 + $0x38] sm:$0xf]
    %v70 = vld [vmem:[#allocation2 + $0x3c] sm:$0xf]
    %v71 = vld [vmem:[#allocation5] sm:$0xf]
    %v72 = vld [vmem:[#allocation5 + $0x4] sm:$0xf]
    %v73 = vld [vmem:[#allocation5 + $0x8] sm:$0xf]
    %v74 = vld [vmem:[#allocation5 + $0xc] sm:$0xf]
    %v75 = vld [vmem:[#allocation5 + $0x10] sm:$0xf]
    %v76 = vld [vmem:[#allocation5 + $0x14] sm:$0xf]
    %v77 = vld [vmem:[#allocation5 + $0x18] sm:$0xf]
    %v78 = vld [vmem:[#allocation5 + $0x1c] sm:$0xf]
    %v79 = vld [vmem:[#allocation5 + $0x20] sm:$0xf]
    %v80 = vld [vmem:[#allocation5 + $0x24] sm:$0xf]
    %v81 = vld [vmem:[#allocation5 + $0x28] sm:$0xf]
    %v82 = vld [vmem:[#allocation5 + $0x2c] sm:$0xf]
    %v83 = vld [vmem:[#allocation5 + $0x30] sm:$0xf]
    %v84 = vld [vmem:[#allocation5 + $0x34] sm:$0xf]
    %v85 = vld [vmem:[#allocation5 + $0x38] sm:$0xf]
    %v86 = vld [vmem:[#allocation5 + $0x3c] sm:$0xf]
    %v87 = vld [vmem:[#allocation5 + $0x40] sm:$0xf]
    %v88 = vld [vmem:[#allocation5 + $0x44] sm:$0xf]
    %v89 = vld [vmem:[#allocation5 + $0x48] sm:$0xf]
    %v90 = vld [vmem:[#allocation5 + $0x4c] sm:$0xf]
    %v91 = vld [vmem:[#allocation5 + $0x50] sm:$0xf]
    %v92 = vld [vmem:[#allocation5 + $0x54] sm:$0xf]
    %v93 = vld [vmem:[#allocation5 + $0x58] sm:$0xf]
    %v94 = vld [vmem:[#allocation5 + $0x5c] sm:$0xf]
    %v95 = vld [vmem:[#allocation5 + $0x60] sm:$0xf]
    %v96 = vld [vmem:[#allocation5 + $0x64] sm:$0xf]
    %v97 = vld [vmem:[#allocation5 + $0x68] sm:$0xf]
    %v98 = vld [vmem:[#allocation5 + $0x6c] sm:$0xf]
    %v99 = vld [vmem:[#allocation5 + $0x70] sm:$0xf]
    %v100 = vld [vmem:[#allocation5 + $0x74] sm:$0xf]
    %v101 = vld [vmem:[#allocation5 + $0x78] sm:$0xf]
    %v102 = vld [vmem:[#allocation5 + $0x7c] sm:$0xf]
    %v103 = vld [vmem:[#allocation5 + $0x80] sm:$0xf]
    %v104 = vld [vmem:[#allocation5 + $0x84] sm:$0xf]
    %v105 = vld [vmem:[#allocation5 + $0x88] sm:$0xf]
    %v106 = vld [vmem:[#allocation5 + $0x8c] sm:$0xf]
    %v107 = vld [vmem:[#allocation5 + $0x90] sm:$0xf]
    %v108 = vld [vmem:[#allocation5 + $0x94] sm:$0xf]
    %v109 = vld [vmem:[#allocation5 + $0x98] sm:$0xf]
    %v110 = vld [vmem:[#allocation5 + $0x9c] sm:$0xf]
    %v111 = vld [vmem:[#allocation5 + $0xa0] sm:$0xf]
    %v112 = vld [vmem:[#allocation5 + $0xa4] sm:$0xf]
    %v113 = vld [vmem:[#allocation5 + $0xa8] sm:$0xf]
    %v114 = vld [vmem:[#allocation5 + $0xac] sm:$0xf]
    %v115 = vld [vmem:[#allocation5 + $0xb0] sm:$0xf]
    %v116 = vld [vmem:[#allocation5 + $0xb4] sm:$0xf]
    %v117 = vld [vmem:[#allocation5 + $0xb8] sm:$0xf]
    %v118 = vld [vmem:[#allocation5 + $0xbc] sm:$0xf]
    %v119 = vld [vmem:[#allocation5 + $0xc0] sm:$0xf]
    %v120 = vld [vmem:[#allocation5 + $0xc4] sm:$0xf]
    %v121 = vld [vmem:[#allocation5 + $0xc8] sm:$0xf]
    %v122 = vld [vmem:[#allocation5 + $0xcc] sm:$0xf]
    %v123 = vld [vmem:[#allocation5 + $0xd0] sm:$0xf]
    %v124 = vld [vmem:[#allocation5 + $0xd4] sm:$0xf]
    %v125 = vld [vmem:[#allocation5 + $0xd8] sm:$0xf]
    %v126 = vld [vmem:[#allocation5 + $0xdc] sm:$0xf]
    %v127 = vld [vmem:[#allocation5 + $0xe0] sm:$0xf]
    %v128 = vld [vmem:[#allocation5 + $0xe4] sm:$0xf]
    %v129 = vld [vmem:[#allocation5 + $0xe8] sm:$0xf]
    %v130 = vld [vmem:[#allocation5 + $0xec] sm:$0xf]
    %v131 = vld [vmem:[#allocation5 + $0xf0] sm:$0xf]
    %v132 = vld [vmem:[#allocation5 + $0xf4] sm:$0xf]
    %v133 = vld [vmem:[#allocation5 + $0xf8] sm:$0xf]
    %v134 = vld [vmem:[#allocation5 + $0xfc] sm:$0xf]
    %v135 = vld [vmem:[#allocation7] sm:$0xf]
    %v137 = vlaneseq
    %v138 = vshrl.u32 %v137, 7
    %v139 = vsub.s32 0, %v138
    %v140 = vrot.slane %v135, %v139
    %v141 = vlaneseq
    %v142 = vshrl.u32 %v141, 7
    %v143 = vsub.s32 1, %v142
    %v144 = vrot.slane %v135, %v143
    %v145 = vlaneseq
    %v146 = vshrl.u32 %v145, 7
    %v147 = vsub.s32 2, %v146
    %v148 = vrot.slane %v135, %v147
    %v149 = vlaneseq
    %v150 = vshrl.u32 %v149, 7
    %v151 = vsub.s32 3, %v150
    %v152 = vrot.slane %v135, %v151
    %v173 = vunpack.c.l.b16 %v55
    %v174 = vunpack.c.l.b16 %v56
    %v175 = vunpack.c.l.b16 %v57
    %v176 = vunpack.c.l.b16 %v58
    %v177 = vunpack.c.l.b16 %v59
    %v178 = vunpack.c.l.b16 %v60
    %v179 = vunpack.c.l.b16 %v61
    %v180 = vunpack.c.l.b16 %v62
    %v181 = vunpack.c.l.b16 %v63
    %v182 = vunpack.c.l.b16 %v64
    %v183 = vunpack.c.l.b16 %v65
    %v184 = vunpack.c.l.b16 %v66
    %v185 = vunpack.c.l.b16 %v67
    %v186 = vunpack.c.l.b16 %v68
    %v187 = vunpack.c.l.b16 %v69
    %v188 = vunpack.c.l.b16 %v70
    %v189 = vpack.c.b16 %v174, %v173
    %v190 = vpack.c.b16 %v176, %v175
    %v191 = vpack.c.b16 %v178, %v177
    %v192 = vpack.c.b16 %v180, %v179
    %v193 = vpack.c.b16 %v182, %v181
    %v194 = vpack.c.b16 %v184, %v183
    %v195 = vpack.c.b16 %v186, %v185
    %v196 = vpack.c.b16 %v188, %v187
    %v269 = vunpack.c.l.b16 %v71
    %v270 = vunpack.c.l.b16 %v72
    %v271 = vunpack.c.l.b16 %v73
    %v272 = vunpack.c.l.b16 %v74
    %v273 = vunpack.c.l.b16 %v75
    %v274 = vunpack.c.l.b16 %v76
    %v275 = vunpack.c.l.b16 %v77
    %v276 = vunpack.c.l.b16 %v78
    %v277 = vunpack.c.l.b16 %v79
    %v278 = vunpack.c.l.b16 %v80
    %v279 = vunpack.c.l.b16 %v81
    %v280 = vunpack.c.l.b16 %v82
    %v281 = vunpack.c.l.b16 %v83
    %v282 = vunpack.c.l.b16 %v84
    %v283 = vunpack.c.l.b16 %v85
    %v284 = vunpack.c.l.b16 %v86
    %v285 = vunpack.c.l.b16 %v87
    %v286 = vunpack.c.l.b16 %v88
    %v287 = vunpack.c.l.b16 %v89
    %v288 = vunpack.c.l.b16 %v90
    %v289 = vunpack.c.l.b16 %v91
    %v290 = vunpack.c.l.b16 %v92
    %v291 = vunpack.c.l.b16 %v93
    %v292 = vunpack.c.l.b16 %v94
    %v293 = vunpack.c.l.b16 %v95
    %v294 = vunpack.c.l.b16 %v96
    %v295 = vunpack.c.l.b16 %v97
    %v296 = vunpack.c.l.b16 %v98
    %v297 = vunpack.c.l.b16 %v99
    %v298 = vunpack.c.l.b16 %v100
    %v299 = vunpack.c.l.b16 %v101
    %v300 = vunpack.c.l.b16 %v102
    %v301 = vunpack.c.l.b16 %v103
    %v302 = vunpack.c.l.b16 %v104
    %v303 = vunpack.c.l.b16 %v105
    %v304 = vunpack.c.l.b16 %v106
    %v305 = vunpack.c.l.b16 %v107
    %v306 = vunpack.c.l.b16 %v108
    %v307 = vunpack.c.l.b16 %v109
    %v308 = vunpack.c.l.b16 %v110
    %v309 = vunpack.c.l.b16 %v111
    %v310 = vunpack.c.l.b16 %v112
    %v311 = vunpack.c.l.b16 %v113
    %v312 = vunpack.c.l.b16 %v114
    %v313 = vunpack.c.l.b16 %v115
    %v314 = vunpack.c.l.b16 %v116
    %v315 = vunpack.c.l.b16 %v117
    %v316 = vunpack.c.l.b16 %v118
    %v317 = vunpack.c.l.b16 %v119
    %v318 = vunpack.c.l.b16 %v120
    %v319 = vunpack.c.l.b16 %v121
    %v320 = vunpack.c.l.b16 %v122
    %v321 = vunpack.c.l.b16 %v123
    %v322 = vunpack.c.l.b16 %v124
    %v323 = vunpack.c.l.b16 %v125
    %v324 = vunpack.c.l.b16 %v126
    %v325 = vunpack.c.l.b16 %v127
    %v326 = vunpack.c.l.b16 %v128
    %v327 = vunpack.c.l.b16 %v129
    %v328 = vunpack.c.l.b16 %v130
    %v329 = vunpack.c.l.b16 %v131
    %v330 = vunpack.c.l.b16 %v132
    %v331 = vunpack.c.l.b16 %v133
    %v332 = vunpack.c.l.b16 %v134
    %v333 = vpack.c.b16 %v270, %v269
    %v334 = vpack.c.b16 %v272, %v271
    %v335 = vpack.c.b16 %v274, %v273
    %v336 = vpack.c.b16 %v276, %v275
    %v337 = vpack.c.b16 %v278, %v277
    %v338 = vpack.c.b16 %v280, %v279
    %v339 = vpack.c.b16 %v282, %v281
    %v340 = vpack.c.b16 %v284, %v283
    %v341 = vpack.c.b16 %v286, %v285
    %v342 = vpack.c.b16 %v288, %v287
    %v343 = vpack.c.b16 %v290, %v289
    %v344 = vpack.c.b16 %v292, %v291
    %v345 = vpack.c.b16 %v294, %v293
    %v346 = vpack.c.b16 %v296, %v295
    %v347 = vpack.c.b16 %v298, %v297
    %v348 = vpack.c.b16 %v300, %v299
    %v349 = vpack.c.b16 %v302, %v301
    %v350 = vpack.c.b16 %v304, %v303
    %v351 = vpack.c.b16 %v306, %v305
    %v352 = vpack.c.b16 %v308, %v307
    %v353 = vpack.c.b16 %v310, %v309
    %v354 = vpack.c.b16 %v312, %v311
    %v355 = vpack.c.b16 %v314, %v313
    %v356 = vpack.c.b16 %v316, %v315
    %v357 = vpack.c.b16 %v318, %v317
    %v358 = vpack.c.b16 %v320, %v319
    %v359 = vpack.c.b16 %v322, %v321
    %v360 = vpack.c.b16 %v324, %v323
    %v361 = vpack.c.b16 %v326, %v325
    %v362 = vpack.c.b16 %v328, %v327
    %v363 = vpack.c.b16 %v330, %v329
    %v364 = vpack.c.b16 %v332, %v331
    %397 = vmatprep.subr.bf16.mxu0 0
    %398 = vmatpush1.bf16.xpose.msra.mxu0 %v333
    %399 = vmatprep.subr.bf16.mxu0 0
    %400 = vmatpush1.bf16.xpose.msra.mxu0 %v334
    %401 = vmatprep.subr.bf16.mxu0 0
    %402 = vmatpush1.bf16.xpose.msra.mxu0 %v335
    %403 = vmatprep.subr.bf16.mxu0 0
    %404 = vmatpush1.bf16.xpose.msra.mxu0 %v336
    %405 = vmatprep.subr.bf16.mxu0 0
    %406 = vmatpush1.bf16.xpose.msra.mxu0 %v337
    %407 = vmatprep.subr.bf16.mxu0 0
    %408 = vmatpush1.bf16.xpose.msra.mxu0 %v338
    %409 = vmatprep.subr.bf16.mxu0 0
    %410 = vmatpush1.bf16.xpose.msra.mxu0 %v339
    %411 = vmatprep.subr.bf16.mxu0 0
    %412 = vmatpush1.bf16.xpose.msra.mxu0 %v340
    %413 = vmatprep.subr.bf16.mxu0 0
    %414 = vmatpush1.bf16.xpose.msra.mxu0 %v341
    %415 = vmatprep.subr.bf16.mxu0 0
    %416 = vmatpush1.bf16.xpose.msra.mxu0 %v342
    %417 = vmatprep.subr.bf16.mxu0 0
    %418 = vmatpush1.bf16.xpose.msra.mxu0 %v343
    %419 = vmatprep.subr.bf16.mxu0 0
    %420 = vmatpush1.bf16.xpose.msra.mxu0 %v344
    %421 = vmatprep.subr.bf16.mxu0 0
    %422 = vmatpush1.bf16.xpose.msra.mxu0 %v345
    %423 = vmatprep.subr.bf16.mxu0 0
    %424 = vmatpush1.bf16.xpose.msra.mxu0 %v346
    %425 = vmatprep.subr.bf16.mxu0 0
    %426 = vmatpush1.bf16.xpose.msra.mxu0 %v347
    %427 = vmatprep.subr.bf16.mxu0 0
    %428 = vmatpush1.bf16.xpose.msra.mxu0 %v348
    %429 = vmatprep.mubr.bf16.mxu0 0
    %430 = vmatmul.mubr.bf16.gmra.mrb[0].mxu0 %v189
    %v431 = vpop.f32.mrb[0].mxu0
    %v432 = vadd.f32 %v140, %v431
    %v433 = vpop.f32.mrb[0].mxu0
    %v434 = vadd.f32 %v144, %v433
    %v435 = vpop.f32.mrb[0].mxu0
    %v436 = vadd.f32 %v140, %v435
    %v437 = vpop.f32.mrb[0].mxu0
    %v438 = vadd.f32 %v144, %v437
    %439 = vmatprep.mubr.bf16.mxu0 0
    %440 = vmatmul.mubr.bf16.gmra.mrb[0].mxu0 %v190
    %v441 = vpop.f32.mrb[0].mxu0
    %v442 = vadd.f32 %v140, %v441
    %v443 = vpop.f32.mrb[0].mxu0
    %v444 = vadd.f32 %v144, %v443
    %v445 = vpop.f32.mrb[0].mxu0
    %v446 = vadd.f32 %v140, %v445
    %v447 = vpop.f32.mrb[0].mxu0
    %v448 = vadd.f32 %v144, %v447
    %449 = vmatprep.mubr.bf16.mxu0 0
    %450 = vmatmul.mubr.bf16.gmra.mrb[0].mxu0 %v191
    %v451 = vpop.f32.mrb[0].mxu0
    %v452 = vadd.f32 %v140, %v451
    %v453 = vpop.f32.mrb[0].mxu0
    %v454 = vadd.f32 %v144, %v453
    %v455 = vpop.f32.mrb[0].mxu0
    %v456 = vadd.f32 %v140, %v455
    %v457 = vpop.f32.mrb[0].mxu0
    %v458 = vadd.f32 %v144, %v457
    %459 = vmatprep.mubr.bf16.mxu0 0
    %460 = vmatmul.mubr.bf16.gmra.mrb[0].mxu0 %v192
    %v461 = vpop.f32.mrb[0].mxu0
    %v462 = vadd.f32 %v140, %v461
    %v463 = vpop.f32.mrb[0].mxu0
    %v464 = vadd.f32 %v144, %v463
    %v465 = vpop.f32.mrb[0].mxu0
    %v466 = vadd.f32 %v140, %v465
    %v467 = vpop.f32.mrb[0].mxu0
    %v468 = vadd.f32 %v144, %v467
    %469 = vmatprep.mubr.bf16.mxu0 0
    %470 = vmatmul.mubr.bf16.gmra.mrb[0].mxu0 %v193
    %v471 = vpop.f32.mrb[0].mxu0
    %v472 = vadd.f32 %v140, %v471
    %v473 = vpop.f32.mrb[0].mxu0
    %v474 = vadd.f32 %v144, %v473
    %v475 = vpop.f32.mrb[0].mxu0
    %v476 = vadd.f32 %v140, %v475
    %v477 = vpop.f32.mrb[0].mxu0
    %v478 = vadd.f32 %v144, %v477
    %479 = vmatprep.mubr.bf16.mxu0 0
    %480 = vmatmul.mubr.bf16.gmra.mrb[0].mxu0 %v194
    %v481 = vpop.f32.mrb[0].mxu0
    %v482 = vadd.f32 %v140, %v481
    %v483 = vpop.f32.mrb[0].mxu0
    %v484 = vadd.f32 %v144, %v483
    %v485 = vpop.f32.mrb[0].mxu0
    %v486 = vadd.f32 %v140, %v485
    %v487 = vpop.f32.mrb[0].mxu0
    %v488 = vadd.f32 %v144, %v487
    %489 = vmatprep.mubr.bf16.mxu0 0
    %490 = vmatmul.mubr.bf16.gmra.mrb[0].mxu0 %v195
    %v491 = vpop.f32.mrb[0].mxu0
    %v492 = vadd.f32 %v140, %v491
    %v493 = vpop.f32.mrb[0].mxu0
    %v494 = vadd.f32 %v144, %v493
    %v495 = vpop.f32.mrb[0].mxu0
    %v496 = vadd.f32 %v140, %v495
    %v497 = vpop.f32.mrb[0].mxu0
    %v498 = vadd.f32 %v144, %v497
    %499 = vmatprep.mubr.bf16.mxu0 0
    %500 = vmatmul.mubr.bf16.gmra.mrb[0].mxu0 %v196
    %v501 = vpop.f32.mrb[0].mxu0
    %v502 = vadd.f32 %v140, %v501
    %v503 = vpop.f32.mrb[0].mxu0
    %v504 = vadd.f32 %v144, %v503
    %v505 = vpop.f32.mrb[0].mxu0
    %v506 = vadd.f32 %v140, %v505
    %v507 = vpop.f32.mrb[0].mxu0
    %v508 = vadd.f32 %v144, %v507
    %509 = vdwg.mxu0
    %510 = vmatprep.subr.bf16.mxu0 0
    %511 = vmatpush1.bf16.xpose.msra.mxu0 %v349
    %512 = vmatprep.subr.bf16.mxu0 0
    %513 = vmatpush1.bf16.xpose.msra.mxu0 %v350
    %514 = vmatprep.subr.bf16.mxu0 0
    %515 = vmatpush1.bf16.xpose.msra.mxu0 %v351
    %516 = vmatprep.subr.bf16.mxu0 0
    %517 = vmatpush1.bf16.xpose.msra.mxu0 %v352
    %518 = vmatprep.subr.bf16.mxu0 0
    %519 = vmatpush1.bf16.xpose.msra.mxu0 %v353
    %520 = vmatprep.subr.bf16.mxu0 0
    %521 = vmatpush1.bf16.xpose.msra.mxu0 %v354
    %522 = vmatprep.subr.bf16.mxu0 0
    %523 = vmatpush1.bf16.xpose.msra.mxu0 %v355
    %524 = vmatprep.subr.bf16.mxu0 0
    %525 = vmatpush1.bf16.xpose.msra.mxu0 %v356
    %526 = vmatprep.subr.bf16.mxu0 0
    %527 = vmatpush1.bf16.xpose.msra.mxu0 %v357
    %528 = vmatprep.subr.bf16.mxu0 0
    %529 = vmatpush1.bf16.xpose.msra.mxu0 %v358
    %530 = vmatprep.subr.bf16.mxu0 0
    %531 = vmatpush1.bf16.xpose.msra.mxu0 %v359
    %532 = vmatprep.subr.bf16.mxu0 0
    %533 = vmatpush1.bf16.xpose.msra.mxu0 %v360
    %534 = vmatprep.subr.bf16.mxu0 0
    %535 = vmatpush1.bf16.xpose.msra.mxu0 %v361
    %536 = vmatprep.subr.bf16.mxu0 0
    %537 = vmatpush1.bf16.xpose.msra.mxu0 %v362
    %538 = vmatprep.subr.bf16.mxu0 0
    %539 = vmatpush1.bf16.xpose.msra.mxu0 %v363
    %540 = vmatprep.subr.bf16.mxu0 0
    %541 = vmatpush1.bf16.xpose.msra.mxu0 %v364
    %542 = vmatprep.mubr.bf16.mxu0 0
    %543 = vmatmul.mubr.bf16.gmra.mrb[0].mxu0 %v189
    %v544 = vpop.f32.mrb[0].mxu0
    %v545 = vadd.f32 %v148, %v544
    %v546 = vpop.f32.mrb[0].mxu0
    %v547 = vadd.f32 %v152, %v546
    %v548 = vpop.f32.mrb[0].mxu0
    %v549 = vadd.f32 %v148, %v548
    %v550 = vpop.f32.mrb[0].mxu0
    %v551 = vadd.f32 %v152, %v550
    %552 = vmatprep.mubr.bf16.mxu0 0
    %553 = vmatmul.mubr.bf16.gmra.mrb[0].mxu0 %v190
    %v554 = vpop.f32.mrb[0].mxu0
    %v555 = vadd.f32 %v148, %v554
    %v556 = vpop.f32.mrb[0].mxu0
    %v557 = vadd.f32 %v152, %v556
    %v558 = vpop.f32.mrb[0].mxu0
    %v559 = vadd.f32 %v148, %v558
    %v560 = vpop.f32.mrb[0].mxu0
    %v561 = vadd.f32 %v152, %v560
    %562 = vmatprep.mubr.bf16.mxu0 0
    %563 = vmatmul.mubr.bf16.gmra.mrb[0].mxu0 %v191
    %v564 = vpop.f32.mrb[0].mxu0
    %v565 = vadd.f32 %v148, %v564
    %v566 = vpop.f32.mrb[0].mxu0
    %v567 = vadd.f32 %v152, %v566
    %v568 = vpop.f32.mrb[0].mxu0
    %v569 = vadd.f32 %v148, %v568
    %v570 = vpop.f32.mrb[0].mxu0
    %v571 = vadd.f32 %v152, %v570
    %572 = vmatprep.mubr.bf16.mxu0 0
    %573 = vmatmul.mubr.bf16.gmra.mrb[0].mxu0 %v192
    %v574 = vpop.f32.mrb[0].mxu0
    %v575 = vadd.f32 %v148, %v574
    %v576 = vpop.f32.mrb[0].mxu0
    %v577 = vadd.f32 %v152, %v576
    %v578 = vpop.f32.mrb[0].mxu0
    %v579 = vadd.f32 %v148, %v578
    %v580 = vpop.f32.mrb[0].mxu0
    %v581 = vadd.f32 %v152, %v580
    %582 = vmatprep.mubr.bf16.mxu0 0
    %583 = vmatmul.mubr.bf16.gmra.mrb[0].mxu0 %v193
    %v584 = vpop.f32.mrb[0].mxu0
    %v585 = vadd.f32 %v148, %v584
    %v586 = vpop.f32.mrb[0].mxu0
    %v587 = vadd.f32 %v152, %v586
    %v588 = vpop.f32.mrb[0].mxu0
    %v589 = vadd.f32 %v148, %v588
    %v590 = vpop.f32.mrb[0].mxu0
    %v591 = vadd.f32 %v152, %v590
    %592 = vmatprep.mubr.bf16.mxu0 0
    %593 = vmatmul.mubr.bf16.gmra.mrb[0].mxu0 %v194
    %v594 = vpop.f32.mrb[0].mxu0
    %v595 = vadd.f32 %v148, %v594
    %v596 = vpop.f32.mrb[0].mxu0
    %v597 = vadd.f32 %v152, %v596
    %v598 = vpop.f32.mrb[0].mxu0
    %v599 = vadd.f32 %v148, %v598
    %v600 = vpop.f32.mrb[0].mxu0
    %v601 = vadd.f32 %v152, %v600
    %602 = vmatprep.mubr.bf16.mxu0 0
    %603 = vmatmul.mubr.bf16.gmra.mrb[0].mxu0 %v195
    %v604 = vpop.f32.mrb[0].mxu0
    %v605 = vadd.f32 %v148, %v604
    %v606 = vpop.f32.mrb[0].mxu0
    %v607 = vadd.f32 %v152, %v606
    %v608 = vpop.f32.mrb[0].mxu0
    %v609 = vadd.f32 %v148, %v608
    %v610 = vpop.f32.mrb[0].mxu0
    %v611 = vadd.f32 %v152, %v610
    %612 = vmatprep.mubr.bf16.mxu0 0
    %613 = vmatmul.mubr.bf16.gmra.mrb[0].mxu0 %v196
    %v614 = vpop.f32.mrb[0].mxu0
    %v615 = vadd.f32 %v148, %v614
    %v616 = vpop.f32.mrb[0].mxu0
    %v617 = vadd.f32 %v152, %v616
    %v618 = vpop.f32.mrb[0].mxu0
    %v619 = vadd.f32 %v148, %v618
    %v620 = vpop.f32.mrb[0].mxu0
    %v621 = vadd.f32 %v152, %v620
    %622 = vdwg.mxu0
    %v623 = vmul.f32 %v432, 0.5
    %v624 = vmul.f32 %v434, 0.5
    %v625 = vmul.f32 %v545, 0.5
    %v626 = vmul.f32 %v547, 0.5
    %v627 = vmul.f32 %v436, 0.5
    %v628 = vmul.f32 %v438, 0.5
    %v629 = vmul.f32 %v549, 0.5
    %v630 = vmul.f32 %v551, 0.5
    %v631 = vmul.f32 %v442, 0.5
    %v632 = vmul.f32 %v444, 0.5
    %v633 = vmul.f32 %v555, 0.5
    %v634 = vmul.f32 %v557, 0.5
    %v635 = vmul.f32 %v446, 0.5
    %v636 = vmul.f32 %v448, 0.5
    %v637 = vmul.f32 %v559, 0.5
    %v638 = vmul.f32 %v561, 0.5
    %v639 = vmul.f32 %v452, 0.5
    %v640 = vmul.f32 %v454, 0.5
    %v641 = vmul.f32 %v565, 0.5
    %v642 = vmul.f32 %v567, 0.5
    %v643 = vmul.f32 %v456, 0.5
    %v644 = vmul.f32 %v458, 0.5
    %v645 = vmul.f32 %v569, 0.5
    %v646 = vmul.f32 %v571, 0.5
    %v647 = vmul.f32 %v462, 0.5
    %v648 = vmul.f32 %v464, 0.5
    %v649 = vmul.f32 %v575, 0.5
    %v650 = vmul.f32 %v577, 0.5
    %v651 = vmul.f32 %v466, 0.5
    %v652 = vmul.f32 %v468, 0.5
    %v653 = vmul.f32 %v579, 0.5
    %v654 = vmul.f32 %v581, 0.5
    %v655 = vmul.f32 %v472, 0.5
    %v656 = vmul.f32 %v474, 0.5
    %v657 = vmul.f32 %v585, 0.5
    %v658 = vmul.f32 %v587, 0.5
    %v659 = vmul.f32 %v476, 0.5
    %v660 = vmul.f32 %v478, 0.5
    %v661 = vmul.f32 %v589, 0.5
    %v662 = vmul.f32 %v591, 0.5
    %v663 = vmul.f32 %v482, 0.5
    %v664 = vmul.f32 %v484, 0.5
    %v665 = vmul.f32 %v595, 0.5
    %v666 = vmul.f32 %v597, 0.5
    %v667 = vmul.f32 %v486, 0.5
    %v668 = vmul.f32 %v488, 0.5
    %v669 = vmul.f32 %v599, 0.5
    %v670 = vmul.f32 %v601, 0.5
    %v671 = vmul.f32 %v492, 0.5
    %v672 = vmul.f32 %v494, 0.5
    %v673 = vmul.f32 %v605, 0.5
    %v674 = vmul.f32 %v607, 0.5
    %v675 = vmul.f32 %v496, 0.5
    %v676 = vmul.f32 %v498, 0.5
    %v677 = vmul.f32 %v609, 0.5
    %v678 = vmul.f32 %v611, 0.5
    %v679 = vmul.f32 %v502, 0.5
    %v680 = vmul.f32 %v504, 0.5
    %v681 = vmul.f32 %v615, 0.5
    %v682 = vmul.f32 %v617, 0.5
    %v683 = vmul.f32 %v506, 0.5
    %v684 = vmul.f32 %v508, 0.5
    %v685 = vmul.f32 %v619, 0.5
    %v686 = vmul.f32 %v621, 0.5
    %v687 = vmul.f32 %v432, 0.70710677
    %v688 = vmul.f32 %v434, 0.70710677
    %v689 = vmul.f32 %v545, 0.70710677
    %v690 = vmul.f32 %v547, 0.70710677
    %v691 = vmul.f32 %v436, 0.70710677
    %v692 = vmul.f32 %v438, 0.70710677
    %v693 = vmul.f32 %v549, 0.70710677
    %v694 = vmul.f32 %v551, 0.70710677
    %v695 = vmul.f32 %v442, 0.70710677
    %v696 = vmul.f32 %v444, 0.70710677
    %v697 = vmul.f32 %v555, 0.70710677
    %v698 = vmul.f32 %v557, 0.70710677
    %v699 = vmul.f32 %v446, 0.70710677
    %v700 = vmul.f32 %v448, 0.70710677
    %v701 = vmul.f32 %v559, 0.70710677
    %v702 = vmul.f32 %v561, 0.70710677
    %v703 = vmul.f32 %v452, 0.70710677
    %v704 = vmul.f32 %v454, 0.70710677
    %v705 = vmul.f32 %v565, 0.70710677
    %v706 = vmul.f32 %v567, 0.70710677
    %v707 = vmul.f32 %v456, 0.70710677
    %v708 = vmul.f32 %v458, 0.70710677
    %v709 = vmul.f32 %v569, 0.70710677
    %v710 = vmul.f32 %v571, 0.70710677
    %v711 = vmul.f32 %v462, 0.70710677
    %v712 = vmul.f32 %v464, 0.70710677
    %v713 = vmul.f32 %v575, 0.70710677
    %v714 = vmul.f32 %v577, 0.70710677
    %v715 = vmul.f32 %v466, 0.70710677
    %v716 = vmul.f32 %v468, 0.70710677
    %v717 = vmul.f32 %v579, 0.70710677
    %v718 = vmul.f32 %v581, 0.70710677
    %v719 = vmul.f32 %v472, 0.70710677
    %v720 = vmul.f32 %v474, 0.70710677
    %v721 = vmul.f32 %v585, 0.70710677
    %v722 = vmul.f32 %v587, 0.70710677
    %v723 = vmul.f32 %v476, 0.70710677
    %v724 = vmul.f32 %v478, 0.70710677
    %v725 = vmul.f32 %v589, 0.70710677
    %v726 = vmul.f32 %v591, 0.70710677
    %v727 = vmul.f32 %v482, 0.70710677
    %v728 = vmul.f32 %v484, 0.70710677
    %v729 = vmul.f32 %v595, 0.70710677
    %v730 = vmul.f32 %v597, 0.70710677
    %v731 = vmul.f32 %v486, 0.70710677
    %v732 = vmul.f32 %v488, 0.70710677
    %v733 = vmul.f32 %v599, 0.70710677
    %v734 = vmul.f32 %v601, 0.70710677
    %v735 = vmul.f32 %v492, 0.70710677
    %v736 = vmul.f32 %v494, 0.70710677
    %v737 = vmul.f32 %v605, 0.70710677
    %v738 = vmul.f32 %v607, 0.70710677
    %v739 = vmul.f32 %v496, 0.70710677
    %v740 = vmul.f32 %v498, 0.70710677
    %v741 = vmul.f32 %v609, 0.70710677
    %v742 = vmul.f32 %v611, 0.70710677
    %v743 = vmul.f32 %v502, 0.70710677
    %v744 = vmul.f32 %v504, 0.70710677
    %v745 = vmul.f32 %v615, 0.70710677
    %v746 = vmul.f32 %v617, 0.70710677
    %v747 = vmul.f32 %v506, 0.70710677
    %v748 = vmul.f32 %v508, 0.70710677
    %v749 = vmul.f32 %v619, 0.70710677
    %v750 = vmul.f32 %v621, 0.70710677
    %v751 = verf.f32.pop %v687
    %v752 = verf.f32.pop %v688
    %v753 = verf.f32.pop %v689
    %v754 = verf.f32.pop %v690
    %v755 = verf.f32.pop %v691
    %v756 = verf.f32.pop %v692
    %v757 = verf.f32.pop %v693
    %v758 = verf.f32.pop %v694
    %v759 = verf.f32.pop %v695
    %v760 = verf.f32.pop %v696
    %v761 = verf.f32.pop %v697
    %v762 = verf.f32.pop %v698
    %v763 = verf.f32.pop %v699
    %v764 = verf.f32.pop %v700
    %v765 = verf.f32.pop %v701
    %v766 = verf.f32.pop %v702
    %v767 = verf.f32.pop %v703
    %v768 = verf.f32.pop %v704
    %v769 = verf.f32.pop %v705
    %v770 = verf.f32.pop %v706
    %v771 = verf.f32.pop %v707
    %v772 = verf.f32.pop %v708
    %v773 = verf.f32.pop %v709
    %v774 = verf.f32.pop %v710
    %v775 = verf.f32.pop %v711
    %v776 = verf.f32.pop %v712
    %v777 = verf.f32.pop %v713
    %v778 = verf.f32.pop %v714
    %v779 = verf.f32.pop %v715
    %v780 = verf.f32.pop %v716
    %v781 = verf.f32.pop %v717
    %v782 = verf.f32.pop %v718
    %v783 = verf.f32.pop %v719
    %v784 = verf.f32.pop %v720
    %v785 = verf.f32.pop %v721
    %v786 = verf.f32.pop %v722
    %v787 = verf.f32.pop %v723
    %v788 = verf.f32.pop %v724
    %v789 = verf.f32.pop %v725
    %v790 = verf.f32.pop %v726
    %v791 = verf.f32.pop %v727
    %v792 = verf.f32.pop %v728
    %v793 = verf.f32.pop %v729
    %v794 = verf.f32.pop %v730
    %v795 = verf.f32.pop %v731
    %v796 = verf.f32.pop %v732
    %v797 = verf.f32.pop %v733
    %v798 = verf.f32.pop %v734
    %v799 = verf.f32.pop %v735
    %v800 = verf.f32.pop %v736
    %v801 = verf.f32.pop %v737
    %v802 = verf.f32.pop %v738
    %v803 = verf.f32.pop %v739
    %v804 = verf.f32.pop %v740
    %v805 = verf.f32.pop %v741
    %v806 = verf.f32.pop %v742
    %v807 = verf.f32.pop %v743
    %v808 = verf.f32.pop %v744
    %v809 = verf.f32.pop %v745
    %v810 = verf.f32.pop %v746
    %v811 = verf.f32.pop %v747
    %v812 = verf.f32.pop %v748
    %v813 = verf.f32.pop %v749
    %v814 = verf.f32.pop %v750
    %v815 = vadd.f32 %v751, 1.0
    %v816 = vadd.f32 %v752, 1.0
    %v817 = vadd.f32 %v753, 1.0
    %v818 = vadd.f32 %v754, 1.0
    %v819 = vadd.f32 %v755, 1.0
    %v820 = vadd.f32 %v756, 1.0
    %v821 = vadd.f32 %v757, 1.0
    %v822 = vadd.f32 %v758, 1.0
    %v823 = vadd.f32 %v759, 1.0
    %v824 = vadd.f32 %v760, 1.0
    %v825 = vadd.f32 %v761, 1.0
    %v826 = vadd.f32 %v762, 1.0
    %v827 = vadd.f32 %v763, 1.0
    %v828 = vadd.f32 %v764, 1.0
    %v829 = vadd.f32 %v765, 1.0
    %v830 = vadd.f32 %v766, 1.0
    %v831 = vadd.f32 %v767, 1.0
    %v832 = vadd.f32 %v768, 1.0
    %v833 = vadd.f32 %v769, 1.0
    %v834 = vadd.f32 %v770, 1.0
    %v835 = vadd.f32 %v771, 1.0
    %v836 = vadd.f32 %v772, 1.0
    %v837 = vadd.f32 %v773, 1.0
    %v838 = vadd.f32 %v774, 1.0
    %v839 = vadd.f32 %v775, 1.0
    %v840 = vadd.f32 %v776, 1.0
    %v841 = vadd.f32 %v777, 1.0
    %v842 = vadd.f32 %v778, 1.0
    %v843 = vadd.f32 %v779, 1.0
    %v844 = vadd.f32 %v780, 1.0
    %v845 = vadd.f32 %v781, 1.0
    %v846 = vadd.f32 %v782, 1.0
    %v847 = vadd.f32 %v783, 1.0
    %v848 = vadd.f32 %v784, 1.0
    %v849 = vadd.f32 %v785, 1.0
    %v850 = vadd.f32 %v786, 1.0
    %v851 = vadd.f32 %v787, 1.0
    %v852 = vadd.f32 %v788, 1.0
    %v853 = vadd.f32 %v789, 1.0
    %v854 = vadd.f32 %v790, 1.0
    %v855 = vadd.f32 %v791, 1.0
    %v856 = vadd.f32 %v792, 1.0
    %v857 = vadd.f32 %v793, 1.0
    %v858 = vadd.f32 %v794, 1.0
    %v859 = vadd.f32 %v795, 1.0
    %v860 = vadd.f32 %v796, 1.0
    %v861 = vadd.f32 %v797, 1.0
    %v862 = vadd.f32 %v798, 1.0
    %v863 = vadd.f32 %v799, 1.0
    %v864 = vadd.f32 %v800, 1.0
    %v865 = vadd.f32 %v801, 1.0
    %v866 = vadd.f32 %v802, 1.0
    %v867 = vadd.f32 %v803, 1.0
    %v868 = vadd.f32 %v804, 1.0
    %v869 = vadd.f32 %v805, 1.0
    %v870 = vadd.f32 %v806, 1.0
    %v871 = vadd.f32 %v807, 1.0
    %v872 = vadd.f32 %v808, 1.0
    %v873 = vadd.f32 %v809, 1.0
    %v874 = vadd.f32 %v810, 1.0
    %v875 = vadd.f32 %v811, 1.0
    %v876 = vadd.f32 %v812, 1.0
    %v877 = vadd.f32 %v813, 1.0
    %v878 = vadd.f32 %v814, 1.0
    %v879 = vmul.f32 %v623, %v815
    %v880 = vmul.f32 %v624, %v816
    %v881 = vmul.f32 %v625, %v817
    %v882 = vmul.f32 %v626, %v818
    %v883 = vmul.f32 %v627, %v819
    %v884 = vmul.f32 %v628, %v820
    %v885 = vmul.f32 %v629, %v821
    %v886 = vmul.f32 %v630, %v822
    %v887 = vmul.f32 %v631, %v823
    %v888 = vmul.f32 %v632, %v824
    %v889 = vmul.f32 %v633, %v825
    %v890 = vmul.f32 %v634, %v826
    %v891 = vmul.f32 %v635, %v827
    %v892 = vmul.f32 %v636, %v828
    %v893 = vmul.f32 %v637, %v829
    %v894 = vmul.f32 %v638, %v830
    %v895 = vmul.f32 %v639, %v831
    %v896 = vmul.f32 %v640, %v832
    %v897 = vmul.f32 %v641, %v833
    %v898 = vmul.f32 %v642, %v834
    %v899 = vmul.f32 %v643, %v835
    %v900 = vmul.f32 %v644, %v836
    %v901 = vmul.f32 %v645, %v837
    %v902 = vmul.f32 %v646, %v838
    %v903 = vmul.f32 %v647, %v839
    %v904 = vmul.f32 %v648, %v840
    %v905 = vmul.f32 %v649, %v841
    %v906 = vmul.f32 %v650, %v842
    %v907 = vmul.f32 %v651, %v843
    %v908 = vmul.f32 %v652, %v844
    %v909 = vmul.f32 %v653, %v845
    %v910 = vmul.f32 %v654, %v846
    %v911 = vmul.f32 %v655, %v847
    %v912 = vmul.f32 %v656, %v848
    %v913 = vmul.f32 %v657, %v849
    %v914 = vmul.f32 %v658, %v850
    %v915 = vmul.f32 %v659, %v851
    %v916 = vmul.f32 %v660, %v852
    %v917 = vmul.f32 %v661, %v853
    %v918 = vmul.f32 %v662, %v854
    %v919 = vmul.f32 %v663, %v855
    %v920 = vmul.f32 %v664, %v856
    %v921 = vmul.f32 %v665, %v857
    %v922 = vmul.f32 %v666, %v858
    %v923 = vmul.f32 %v667, %v859
    %v924 = vmul.f32 %v668, %v860
    %v925 = vmul.f32 %v669, %v861
    %v926 = vmul.f32 %v670, %v862
    %v927 = vmul.f32 %v671, %v863
    %v928 = vmul.f32 %v672, %v864
    %v929 = vmul.f32 %v673, %v865
    %v930 = vmul.f32 %v674, %v866
    %v931 = vmul.f32 %v675, %v867
    %v932 = vmul.f32 %v676, %v868
    %v933 = vmul.f32 %v677, %v869
    %v934 = vmul.f32 %v678, %v870
    %v935 = vmul.f32 %v679, %v871
    %v936 = vmul.f32 %v680, %v872
    %v937 = vmul.f32 %v681, %v873
    %v938 = vmul.f32 %v682, %v874
    %v939 = vmul.f32 %v683, %v875
    %v940 = vmul.f32 %v684, %v876
    %v941 = vmul.f32 %v685, %v877
    %v942 = vmul.f32 %v686, %v878
    %943 = vst [vmem:[#allocation8] sm:$0xff] %v879
    %944 = vst [vmem:[#allocation8 + $0x8] sm:$0xff] %v880
    %945 = vst [vmem:[#allocation8 + $0x10] sm:$0xff] %v881
    %946 = vst [vmem:[#allocation8 + $0x18] sm:$0xff] %v882
    %947 = vst [vmem:[#allocation8 + $0x20] sm:$0xff] %v883
    %948 = vst [vmem:[#allocation8 + $0x28] sm:$0xff] %v884
    %949 = vst [vmem:[#allocation8 + $0x30] sm:$0xff] %v885
    %950 = vst [vmem:[#allocation8 + $0x38] sm:$0xff] %v886
    %951 = vst [vmem:[#allocation8 + $0x40] sm:$0xff] %v887
    %952 = vst [vmem:[#allocation8 + $0x48] sm:$0xff] %v888
    %953 = vst [vmem:[#allocation8 + $0x50] sm:$0xff] %v889
    %954 = vst [vmem:[#allocation8 + $0x58] sm:$0xff] %v890
    %955 = vst [vmem:[#allocation8 + $0x60] sm:$0xff] %v891
    %956 = vst [vmem:[#allocation8 + $0x68] sm:$0xff] %v892
    %957 = vst [vmem:[#allocation8 + $0x70] sm:$0xff] %v893
    %958 = vst [vmem:[#allocation8 + $0x78] sm:$0xff] %v894
    %959 = vst [vmem:[#allocation8 + $0x80] sm:$0xff] %v895
    %960 = vst [vmem:[#allocation8 + $0x88] sm:$0xff] %v896
    %961 = vst [vmem:[#allocation8 + $0x90] sm:$0xff] %v897
    %962 = vst [vmem:[#allocation8 + $0x98] sm:$0xff] %v898
    %963 = vst [vmem:[#allocation8 + $0xa0] sm:$0xff] %v899
    %964 = vst [vmem:[#allocation8 + $0xa8] sm:$0xff] %v900
    %965 = vst [vmem:[#allocation8 + $0xb0] sm:$0xff] %v901
    %966 = vst [vmem:[#allocation8 + $0xb8] sm:$0xff] %v902
    %967 = vst [vmem:[#allocation8 + $0xc0] sm:$0xff] %v903
    %968 = vst [vmem:[#allocation8 + $0xc8] sm:$0xff] %v904
    %969 = vst [vmem:[#allocation8 + $0xd0] sm:$0xff] %v905
    %970 = vst [vmem:[#allocation8 + $0xd8] sm:$0xff] %v906
    %971 = vst [vmem:[#allocation8 + $0xe0] sm:$0xff] %v907
    %972 = vst [vmem:[#allocation8 + $0xe8] sm:$0xff] %v908
    %973 = vst [vmem:[#allocation8 + $0xf0] sm:$0xff] %v909
    %974 = vst [vmem:[#allocation8 + $0xf8] sm:$0xff] %v910
    %975 = vst [vmem:[#allocation8 + $0x100] sm:$0xff] %v911
    %976 = vst [vmem:[#allocation8 + $0x108] sm:$0xff] %v912
    %977 = vst [vmem:[#allocation8 + $0x110] sm:$0xff] %v913
    %978 = vst [vmem:[#allocation8 + $0x118] sm:$0xff] %v914
    %979 = vst [vmem:[#allocation8 + $0x120] sm:$0xff] %v915
    %980 = vst [vmem:[#allocation8 + $0x128] sm:$0xff] %v916
    %981 = vst [vmem:[#allocation8 + $0x130] sm:$0xff] %v917
    %982 = vst [vmem:[#allocation8 + $0x138] sm:$0xff] %v918
    %983 = vst [vmem:[#allocation8 + $0x140] sm:$0xff] %v919
    %984 = vst [vmem:[#allocation8 + $0x148] sm:$0xff] %v920
    %985 = vst [vmem:[#allocation8 + $0x150] sm:$0xff] %v921
    %986 = vst [vmem:[#allocation8 + $0x158] sm:$0xff] %v922
    %987 = vst [vmem:[#allocation8 + $0x160] sm:$0xff] %v923
    %988 = vst [vmem:[#allocation8 + $0x168] sm:$0xff] %v924
    %989 = vst [vmem:[#allocation8 + $0x170] sm:$0xff] %v925
    %990 = vst [vmem:[#allocation8 + $0x178] sm:$0xff] %v926
    %991 = vst [vmem:[#allocation8 + $0x180] sm:$0xff] %v927
    %992 = vst [vmem:[#allocation8 + $0x188] sm:$0xff] %v928
    %993 = vst [vmem:[#allocation8 + $0x190] sm:$0xff] %v929
    %994 = vst [vmem:[#allocation8 + $0x198] sm:$0xff] %v930
    %995 = vst [vmem:[#allocation8 + $0x1a0] sm:$0xff] %v931
    %996 = vst [vmem:[#allocation8 + $0x1a8] sm:$0xff] %v932
    %997 = vst [vmem:[#allocation8 + $0x1b0] sm:$0xff] %v933
    %998 = vst [vmem:[#allocation8 + $0x1b8] sm:$0xff] %v934
    %999 = vst [vmem:[#allocation8 + $0x1c0] sm:$0xff] %v935
    %1000 = vst [vmem:[#allocation8 + $0x1c8] sm:$0xff] %v936
    %1001 = vst [vmem:[#allocation8 + $0x1d0] sm:$0xff] %v937
    %1002 = vst [vmem:[#allocation8 + $0x1d8] sm:$0xff] %v938
    %1003 = vst [vmem:[#allocation8 + $0x1e0] sm:$0xff] %v939
    %1004 = vst [vmem:[#allocation8 + $0x1e8] sm:$0xff] %v940
    %1005 = vst [vmem:[#allocation8 + $0x1f0] sm:$0xff] %v941
    %1006 = vst [vmem:[#allocation8 + $0x1f8] sm:$0xff] %v942
    // Predicated region
    $region26: #{bert_intermediate.1} parent=1 // pred_check
      _
    $region27: #{bert_intermediate.1} parent=1 // pred_check_branch
      %1008 = sbr.rel (0) target = $region29
    $region28: #{bert_intermediate.1} parent=1 // pred_region
      %s1010 = ssub.s32 8192, 8192
      %1011 = vsyncadd [#allocation4], %s1010
      %s1012 = sshll.u32 [#allocation8], 4
      %s1013 = int_to_ptr.vmem [resolvable:$true] %s1012
      %1018 = dma.vmem_to_hbm [thread:$0]  %s1013, 8192, %s3, [#allocation4], 512, 512, 32
    $region29: #{bert_intermediate.1} parent=1 // pred_fallthru
      _
    // Predicated region
    $region30: #{bert_intermediate.1} parent=1 // pred_check
      _
    $region31: #{bert_intermediate.1} parent=1 // pred_check_branch
      %1020 = sbr.rel (0) target = $region33
    $region32: #{bert_intermediate.1} parent=1 // pred_region
      %1021 = dma.done [#allocation4], 8192
    $region33: #{bert_intermediate.1} parent=1 // pred_fallthru
      _
    %1022 = vsyncpa [#allocation3], 1
    %1023 = vsyncpa [#allocation6], 1
    %1024 = vsyncpa [#allocation4], 1

</llo_original>
